<compile_context>
chip_gen: v5e
topology: v5e:2x2
jax: 0.10.0
libtpu: 0.0.40
codegen_flags: <defaults>
</compile_context>

<pallas_src>
import jax
import jax.numpy as jnp
from jax.experimental import pallas as pl
from jax.experimental.pallas import tpu as pltpu


def _conv1x1_kernel(x_ref, w_ref, b_ref, o_ref):
    # x_ref: (1, Cin, THW)   input pixels for this (batch, spatial-tile)
    # w_ref: (Cout, Cin)     full weight, VMEM-resident across the grid
    # b_ref: (Cout, 1)       bias, broadcast along the lane (spatial) axis
    # o_ref: (1, Cout, THW)  NCHW output tile
    acc = jnp.dot(w_ref[...], x_ref[0], preferred_element_type=jnp.float32)
    o_ref[0] = (acc + b_ref[...]).astype(o_ref.dtype)


def conv2d_1x1(x_nchw, weight, bias, *, max_spatial_tile=1024):
    """1x1 conv, stride 1, no padding.

    x_nchw: (N, Cin, H, W) float32
    weight: (Cout, Cin, 1, 1) float32
    bias:   (Cout,) float32
    returns (N, Cout, H, W) float32
    """
    n, cin, h, w = x_nchw.shape
    cout = weight.shape[0]
    hw = h * w

    # NCHW -> (N, Cin, H*W): a pure reshape, no data movement.
    x3 = x_nchw.reshape(n, cin, hw)
    w2 = weight.reshape(cout, cin)
    b2 = bias.reshape(cout, 1)

    # Spatial tile: full extent if small, else a lane-dense multiple of 128.
    # Output tile = Cout * THW * 4B = 1056*1024*4 ~= 4.3 MiB; double-buffered
    # total ~9 MiB, inside default scoped VMEM on all generations.
    thw = hw if hw <= max_spatial_tile else max_spatial_tile
    grid = (n, pl.cdiv(hw, thw))

    cost = pl.CostEstimate(
        flops=2 * n * hw * cin * cout,
        transcendentals=0,
        bytes_accessed=4 * (n * hw * cin + cin * cout + cout + n * hw * cout),
    )

    out3 = pl.pallas_call(
        _conv1x1_kernel,
        out_shape=jax.ShapeDtypeStruct((n, cout, hw), x_nchw.dtype),
        grid_spec=pltpu.PrefetchScalarGridSpec(
            num_scalar_prefetch=0,
            grid=grid,
            in_specs=[
                pl.BlockSpec((1, cin, thw), lambda b, s: (b, 0, s)),
                pl.BlockSpec((cout, cin), lambda b, s: (0, 0)),
                pl.BlockSpec((cout, 1), lambda b, s: (0, 0)),
            ],
            out_specs=pl.BlockSpec((1, cout, thw), lambda b, s: (b, 0, s)),
        ),
        compiler_params=pltpu.CompilerParams(
            dimension_semantics=("parallel", "parallel"),
        ),
        cost_estimate=cost,
    )(x3, w2, b2)

    # (N, Cout, H*W) -> (N, Cout, H, W): pure reshape, already NCHW.
    return out3.reshape(n, cout, h, w)


if __name__ == "__main__":
    key = jax.random.PRNGKey(0)
    k_x, k_w, k_b, k_x2 = jax.random.split(key, 4)

    CIN, COUT = 44, 1056

    # Deterministic synthetic parameters (shapes match Conv2d(44, 1056, 1)).
    weight = jax.random.normal(k_w, (COUT, CIN, 1, 1), dtype=jnp.float32) * 0.05
    bias = jax.random.normal(k_b, (COUT,), dtype=jnp.float32) * 0.05

    def reference(x):
        return (
            jnp.einsum("nchw,oc->nohw", x, weight.reshape(COUT, CIN))
            + bias.reshape(1, COUT, 1, 1)
        )

    # Shape from the PyTorch module spec: x265 = randn([1, 44, 1, 1]).
    x = jax.random.normal(k_x, (1, CIN, 1, 1), dtype=jnp.float32)
    out = jax.block_until_ready(conv2d_1x1(x, weight, bias))
    assert out.shape == (1, COUT, 1, 1), out.shape
    assert jnp.allclose(out, reference(x), atol=1e-4, rtol=1e-4), "mismatch (1x1)"

    # Small extra case exercising the batch grid axis + non-trivial spatial.
    x2 = jax.random.normal(k_x2, (2, CIN, 4, 4), dtype=jnp.float32)
    out2 = jax.block_until_ready(conv2d_1x1(x2, weight, bias))
    assert out2.shape == (2, COUT, 4, 4), out2.shape
    assert jnp.allclose(out2, reference(x2), atol=1e-4, rtol=1e-4), "mismatch (4x4)"

    print("KERNEL_OK")
</pallas_src>

<mosaic_0001>
module attributes {stable_mosaic.version = 11 : i64} {
  func.func @_conv1x1_kernel(%arg0: i32, %arg1: i32, %arg2: memref<1x44x1xf32, #tpu.memory_space<vmem>>, %arg3: memref<1056x44xf32, #tpu.memory_space<vmem>>, %arg4: memref<1056x1xf32, #tpu.memory_space<vmem>>, %arg5: memref<1x1056x1xf32, #tpu.memory_space<vmem>>) attributes {dimension_semantics = [#tpu.dimension_semantics<parallel>, #tpu.dimension_semantics<parallel>], iteration_bounds = array<i64: 1, 1>, scalar_prefetch = 0 : i64, scratch_operands = 0 : i64, tpu.core_type = #tpu.core_type<tc>, window_params = [{transform_indices = @transform_0, window_bounds = array<i64: 1, 44, 1>}, {pipeline_mode = #tpu.pipeline_mode<synchronous>, transform_indices = @transform_1, window_bounds = array<i64: 1056, 44>}, {pipeline_mode = #tpu.pipeline_mode<synchronous>, transform_indices = @transform_2, window_bounds = array<i64: 1056, 1>}, {transform_indices = @transform_3, window_bounds = array<i64: 1, 1056, 1>}]} {
    %c0 = arith.constant 0 : index
    %c0_0 = arith.constant 0 : index
    %0 = vector.load %arg3[%c0, %c0_0] : memref<1056x44xf32, #tpu.memory_space<vmem>>, vector<1056x44xf32>
    %c0_1 = arith.constant 0 : index
    %c0_2 = arith.constant 0 : index
    %c0_3 = arith.constant 0 : index
    %1 = vector.load %arg2[%c0_1, %c0_2, %c0_3] : memref<1x44x1xf32, #tpu.memory_space<vmem>>, vector<1x44x1xf32>
    %2 = vector.shape_cast %1 : vector<1x44x1xf32> to vector<44x1xf32>
    %cst = arith.constant dense<0.000000e+00> : vector<1056x1xf32>
    %3 = tpu.matmul %0, %2, %cst {dimension_numbers = #tpu.dot_dimension_numbers<[1], [0], [0], [1], [0, 0, 1, 1], [], []>} : vector<1056x44xf32>, vector<44x1xf32>, vector<1056x1xf32> -> vector<1056x1xf32>
    %c0_4 = arith.constant 0 : index
    %c0_5 = arith.constant 0 : index
    %4 = vector.load %arg4[%c0_4, %c0_5] : memref<1056x1xf32, #tpu.memory_space<vmem>>, vector<1056x1xf32>
    %5 = arith.addf %3, %4 : vector<1056x1xf32>
    %c0_6 = arith.constant 0 : index
    %c0_7 = arith.constant 0 : index
    %c0_8 = arith.constant 0 : index
    %6 = vector.load %arg5[%c0_6, %c0_7, %c0_8] : memref<1x1056x1xf32, #tpu.memory_space<vmem>>, vector<1x1056x1xf32>
    %7 = vector.shape_cast %6 : vector<1x1056x1xf32> to vector<1056x1xf32>
    %8 = vector.shape_cast %5 : vector<1056x1xf32> to vector<1x1056x1xf32>
    tpu.vector_store %arg5[%c0_6, %c0_7, %c0_8], %8 {strides = array<i32>} : memref<1x1056x1xf32, #tpu.memory_space<vmem>>, vector<1x1056x1xf32>,
    return
  }
  func.func @transform_0(%arg0: i32, %arg1: i32) -> (i32, i32, i32) {
    %c0_i32 = arith.constant 0 : i32
    %c0_i32_0 = arith.constant 0 : i32
    return %arg0, %c0_i32, %arg1 : i32, i32, i32
  }
  func.func @transform_1(%arg0: i32, %arg1: i32) -> (i32, i32) {
    %c0_i32 = arith.constant 0 : i32
    %c0_i32_0 = arith.constant 0 : i32
    %c0_i32_1 = arith.constant 0 : i32
    return %c0_i32, %c0_i32_0 : i32, i32
  }
  func.func @transform_2(%arg0: i32, %arg1: i32) -> (i32, i32) {
    %c0_i32 = arith.constant 0 : i32
    %c0_i32_0 = arith.constant 0 : i32
    %c0_i32_1 = arith.constant 0 : i32
    return %c0_i32, %c0_i32_0 : i32, i32
  }
  func.func @transform_3(%arg0: i32, %arg1: i32) -> (i32, i32, i32) {
    %c0_i32 = arith.constant 0 : i32
    %c0_i32_0 = arith.constant 0 : i32
    return %arg0, %c0_i32, %arg1 : i32, i32, i32
  }
}

</mosaic_0001>

<llo_original>
// kernel: tpu_custom_call.1
$region0: #{tpu_custom_call.1}
  #allocation0 [shape = 'u32[]', space=smem, size = 0x4, offset = 0x4, fixed_abs, tag = 'smem constant byte address 0x4 - core index']
  #allocation1 [shape = 'u32[72,128]{1,0:T(1,128)}', space=vmem, size = 0x9000, scoped, tag = 'internal scratch']
  %s0 = inlined_call_operand.vmem [shape: f32[1,44,1], index: 0, kind: input, shape index: {}]
  %s1 = inlined_call_operand.vmem [shape: f32[1056,44], index: 1, kind: input, shape index: {}]
  %s2 = inlined_call_operand.vmem [shape: f32[1056,1], index: 2, kind: input, shape index: {}]
  %s3 = inlined_call_operand.vmem [shape: f32[1,1056,1], index: 3, kind: output, shape index: {}]
  %s4 = sld [smem:[#allocation0]]
  $region22: #{tpu_custom_call.1} parent=0
    _
  %s6 = ssub.s32 1, %s4
  %s7 = scalar_select 0, %s6, %s4
  // Predicated region
  $region2: #{tpu_custom_call.1} parent=0 // pred_check
    _
  $region3: #{tpu_custom_call.1} parent=0 // pred_check_branch
    %9 = sbr.rel (0) target = $region5
  $region4: #{tpu_custom_call.1} parent=0 // pred_region
    _
  $region5: #{tpu_custom_call.1} parent=0 // pred_fallthru
    _
  // Predicated region
  $region6: #{tpu_custom_call.1} parent=0 // pred_check
    _
  $region7: #{tpu_custom_call.1} parent=0 // pred_check_branch
    %11 = sbr.rel (0) target = $region9
  $region8: #{tpu_custom_call.1} parent=0 // pred_region
    _
  $region9: #{tpu_custom_call.1} parent=0 // pred_fallthru
    _
  // Predicated region
  $region10: #{tpu_custom_call.1} parent=0 // pred_check
    _
  $region11: #{tpu_custom_call.1} parent=0 // pred_check_branch
    %13 = sbr.rel (0) target = $region13
  $region12: #{tpu_custom_call.1} parent=0 // pred_region
    _
  $region13: #{tpu_custom_call.1} parent=0 // pred_fallthru
    _
  %v14 = vld [vmem:[%s1] sm:$0xff]
  %v15 = vld [vmem:[%s1 + $0x8] sm:$0xff]
  %v16 = vld [vmem:[%s1 + $0x10] sm:$0xff]
  %v17 = vld [vmem:[%s1 + $0x18] sm:$0xff]
  %v18 = vld [vmem:[%s1 + $0x20] sm:$0xff]
  %v19 = vld [vmem:[%s1 + $0x28] sm:$0xff]
  %v20 = vld [vmem:[%s1 + $0x30] sm:$0xff]
  %v21 = vld [vmem:[%s1 + $0x38] sm:$0xff]
  %v22 = vld [vmem:[%s1 + $0x40] sm:$0xff]
  %v23 = vld [vmem:[%s1 + $0x48] sm:$0xff]
  %v24 = vld [vmem:[%s1 + $0x50] sm:$0xff]
  %v25 = vld [vmem:[%s1 + $0x58] sm:$0xff]
  %v26 = vld [vmem:[%s1 + $0x60] sm:$0xff]
  %v27 = vld [vmem:[%s1 + $0x68] sm:$0xff]
  %v28 = vld [vmem:[%s1 + $0x70] sm:$0xff]
  %v29 = vld [vmem:[%s1 + $0x78] sm:$0xff]
  %v30 = vld [vmem:[%s1 + $0x80] sm:$0xff]
  %v31 = vld [vmem:[%s1 + $0x88] sm:$0xff]
  %v32 = vld [vmem:[%s1 + $0x90] sm:$0xff]
  %v33 = vld [vmem:[%s1 + $0x98] sm:$0xff]
  %v34 = vld [vmem:[%s1 + $0xa0] sm:$0xff]
  %v35 = vld [vmem:[%s1 + $0xa8] sm:$0xff]
  %v36 = vld [vmem:[%s1 + $0xb0] sm:$0xff]
  %v37 = vld [vmem:[%s1 + $0xb8] sm:$0xff]
  %v38 = vld [vmem:[%s1 + $0xc0] sm:$0xff]
  %v39 = vld [vmem:[%s1 + $0xc8] sm:$0xff]
  %v40 = vld [vmem:[%s1 + $0xd0] sm:$0xff]
  %v41 = vld [vmem:[%s1 + $0xd8] sm:$0xff]
  %v42 = vld [vmem:[%s1 + $0xe0] sm:$0xff]
  %v43 = vld [vmem:[%s1 + $0xe8] sm:$0xff]
  %v44 = vld [vmem:[%s1 + $0xf0] sm:$0xff]
  %v45 = vld [vmem:[%s1 + $0xf8] sm:$0xff]
  %v46 = vld [vmem:[%s1 + $0x100] sm:$0xff]
  %v47 = vld [vmem:[%s1 + $0x108] sm:$0xff]
  %v48 = vld [vmem:[%s1 + $0x110] sm:$0xff]
  %v49 = vld [vmem:[%s1 + $0x118] sm:$0xff]
  %v50 = vld [vmem:[%s1 + $0x120] sm:$0xff]
  %v51 = vld [vmem:[%s1 + $0x128] sm:$0xff]
  %v52 = vld [vmem:[%s1 + $0x130] sm:$0xff]
  %v53 = vld [vmem:[%s1 + $0x138] sm:$0xff]
  %v54 = vld [vmem:[%s1 + $0x140] sm:$0xff]
  %v55 = vld [vmem:[%s1 + $0x148] sm:$0xff]
  %v56 = vld [vmem:[%s1 + $0x150] sm:$0xff]
  %v57 = vld [vmem:[%s1 + $0x158] sm:$0xff]
  %v58 = vld [vmem:[%s1 + $0x160] sm:$0xff]
  %v59 = vld [vmem:[%s1 + $0x168] sm:$0xff]
  %v60 = vld [vmem:[%s1 + $0x170] sm:$0xff]
  %v61 = vld [vmem:[%s1 + $0x178] sm:$0xff]
  %v62 = vld [vmem:[%s1 + $0x180] sm:$0xff]
  %v63 = vld [vmem:[%s1 + $0x188] sm:$0xff]
  %v64 = vld [vmem:[%s1 + $0x190] sm:$0xff]
  %v65 = vld [vmem:[%s1 + $0x198] sm:$0xff]
  %v66 = vld [vmem:[%s1 + $0x1a0] sm:$0xff]
  %v67 = vld [vmem:[%s1 + $0x1a8] sm:$0xff]
  %v68 = vld [vmem:[%s1 + $0x1b0] sm:$0xff]
  %v69 = vld [vmem:[%s1 + $0x1b8] sm:$0xff]
  %v70 = vld [vmem:[%s1 + $0x1c0] sm:$0xff]
  %v71 = vld [vmem:[%s1 + $0x1c8] sm:$0xff]
  %v72 = vld [vmem:[%s1 + $0x1d0] sm:$0xff]
  %v73 = vld [vmem:[%s1 + $0x1d8] sm:$0xff]
  %v74 = vld [vmem:[%s1 + $0x1e0] sm:$0xff]
  %v75 = vld [vmem:[%s1 + $0x1e8] sm:$0xff]
  %v76 = vld [vmem:[%s1 + $0x1f0] sm:$0xff]
  %v77 = vld [vmem:[%s1 + $0x1f8] sm:$0xff]
  %v78 = vld [vmem:[%s1 + $0x200] sm:$0xff]
  %v79 = vld [vmem:[%s1 + $0x208] sm:$0xff]
  %v80 = vld [vmem:[%s1 + $0x210] sm:$0xff]
  %v81 = vld [vmem:[%s1 + $0x218] sm:$0xff]
  %v82 = vld [vmem:[%s1 + $0x220] sm:$0xff]
  %v83 = vld [vmem:[%s1 + $0x228] sm:$0xff]
  %v84 = vld [vmem:[%s1 + $0x230] sm:$0xff]
  %v85 = vld [vmem:[%s1 + $0x238] sm:$0xff]
  %v86 = vld [vmem:[%s1 + $0x240] sm:$0xff]
  %v87 = vld [vmem:[%s1 + $0x248] sm:$0xff]
  %v88 = vld [vmem:[%s1 + $0x250] sm:$0xff]
  %v89 = vld [vmem:[%s1 + $0x258] sm:$0xff]
  %v90 = vld [vmem:[%s1 + $0x260] sm:$0xff]
  %v91 = vld [vmem:[%s1 + $0x268] sm:$0xff]
  %v92 = vld [vmem:[%s1 + $0x270] sm:$0xff]
  %v93 = vld [vmem:[%s1 + $0x278] sm:$0xff]
  %v94 = vld [vmem:[%s1 + $0x280] sm:$0xff]
  %v95 = vld [vmem:[%s1 + $0x288] sm:$0xff]
  %v96 = vld [vmem:[%s1 + $0x290] sm:$0xff]
  %v97 = vld [vmem:[%s1 + $0x298] sm:$0xff]
  %v98 = vld [vmem:[%s1 + $0x2a0] sm:$0xff]
  %v99 = vld [vmem:[%s1 + $0x2a8] sm:$0xff]
  %v100 = vld [vmem:[%s1 + $0x2b0] sm:$0xff]
  %v101 = vld [vmem:[%s1 + $0x2b8] sm:$0xff]
  %v102 = vld [vmem:[%s1 + $0x2c0] sm:$0xff]
  %v103 = vld [vmem:[%s1 + $0x2c8] sm:$0xff]
  %v104 = vld [vmem:[%s1 + $0x2d0] sm:$0xff]
  %v105 = vld [vmem:[%s1 + $0x2d8] sm:$0xff]
  %v106 = vld [vmem:[%s1 + $0x2e0] sm:$0xff]
  %v107 = vld [vmem:[%s1 + $0x2e8] sm:$0xff]
  %v108 = vld [vmem:[%s1 + $0x2f0] sm:$0xff]
  %v109 = vld [vmem:[%s1 + $0x2f8] sm:$0xff]
  %v110 = vld [vmem:[%s1 + $0x300] sm:$0xff]
  %v111 = vld [vmem:[%s1 + $0x308] sm:$0xff]
  %v112 = vld [vmem:[%s1 + $0x310] sm:$0xff]
  %v113 = vld [vmem:[%s1 + $0x318] sm:$0xff]
  %v114 = vld [vmem:[%s1 + $0x320] sm:$0xff]
  %v115 = vld [vmem:[%s1 + $0x328] sm:$0xff]
  %v116 = vld [vmem:[%s1 + $0x330] sm:$0xff]
  %v117 = vld [vmem:[%s1 + $0x338] sm:$0xff]
  %v118 = vld [vmem:[%s1 + $0x340] sm:$0xff]
  %v119 = vld [vmem:[%s1 + $0x348] sm:$0xff]
  %v120 = vld [vmem:[%s1 + $0x350] sm:$0xff]
  %v121 = vld [vmem:[%s1 + $0x358] sm:$0xff]
  %v122 = vld [vmem:[%s1 + $0x360] sm:$0xff]
  %v123 = vld [vmem:[%s1 + $0x368] sm:$0xff]
  %v124 = vld [vmem:[%s1 + $0x370] sm:$0xff]
  %v125 = vld [vmem:[%s1 + $0x378] sm:$0xff]
  %v126 = vld [vmem:[%s1 + $0x380] sm:$0xff]
  %v127 = vld [vmem:[%s1 + $0x388] sm:$0xff]
  %v128 = vld [vmem:[%s1 + $0x390] sm:$0xff]
  %v129 = vld [vmem:[%s1 + $0x398] sm:$0xff]
  %v130 = vld [vmem:[%s1 + $0x3a0] sm:$0xff]
  %v131 = vld [vmem:[%s1 + $0x3a8] sm:$0xff]
  %v132 = vld [vmem:[%s1 + $0x3b0] sm:$0xff]
  %v133 = vld [vmem:[%s1 + $0x3b8] sm:$0xff]
  %v134 = vld [vmem:[%s1 + $0x3c0] sm:$0xff]
  %v135 = vld [vmem:[%s1 + $0x3c8] sm:$0xff]
  %v136 = vld [vmem:[%s1 + $0x3d0] sm:$0xff]
  %v137 = vld [vmem:[%s1 + $0x3d8] sm:$0xff]
  %v138 = vld [vmem:[%s1 + $0x3e0] sm:$0xff]
  %v139 = vld [vmem:[%s1 + $0x3e8] sm:$0xff]
  %v140 = vld [vmem:[%s1 + $0x3f0] sm:$0xff]
  %v141 = vld [vmem:[%s1 + $0x3f8] sm:$0xff]
  %v142 = vld [vmem:[%s1 + $0x400] sm:$0xff]
  %v143 = vld [vmem:[%s1 + $0x408] sm:$0xff]
  %v144 = vld [vmem:[%s1 + $0x410] sm:$0xff]
  %v145 = vld [vmem:[%s1 + $0x418] sm:$0xff]
  %v146 = vld [vmem:[%s0] sm:$0xff]
  %v147 = vld [vmem:[%s0 + $0x8] sm:$0xff]
  %v148 = vld [vmem:[%s0 + $0x10] sm:$0xff]
  %v149 = vld [vmem:[%s0 + $0x18] sm:$0xff]
  %v150 = vld [vmem:[%s0 + $0x20] sm:$0xff]
  %v151 = vld [vmem:[%s0 + $0x28] sm:$0xf]
  %v152 = vld [vmem:[%s2] sm:$0xff]
  %v153 = vld [vmem:[%s2 + $0x8] sm:$0xff]
  %v154 = vld [vmem:[%s2 + $0x10] sm:$0xff]
  %v155 = vld [vmem:[%s2 + $0x18] sm:$0xff]
  %v156 = vld [vmem:[%s2 + $0x20] sm:$0xff]
  %v157 = vld [vmem:[%s2 + $0x28] sm:$0xff]
  %v158 = vld [vmem:[%s2 + $0x30] sm:$0xff]
  %v159 = vld [vmem:[%s2 + $0x38] sm:$0xff]
  %v160 = vld [vmem:[%s2 + $0x40] sm:$0xff]
  %v161 = vld [vmem:[%s2 + $0x48] sm:$0xff]
  %v162 = vld [vmem:[%s2 + $0x50] sm:$0xff]
  %v163 = vld [vmem:[%s2 + $0x58] sm:$0xff]
  %v164 = vld [vmem:[%s2 + $0x60] sm:$0xff]
  %v165 = vld [vmem:[%s2 + $0x68] sm:$0xff]
  %v166 = vld [vmem:[%s2 + $0x70] sm:$0xff]
  %v167 = vld [vmem:[%s2 + $0x78] sm:$0xff]
  %v168 = vld [vmem:[%s2 + $0x80] sm:$0xff]
  %v169 = vld [vmem:[%s2 + $0x88] sm:$0xff]
  %v170 = vld [vmem:[%s2 + $0x90] sm:$0xff]
  %v171 = vld [vmem:[%s2 + $0x98] sm:$0xff]
  %v172 = vld [vmem:[%s2 + $0xa0] sm:$0xff]
  %v173 = vld [vmem:[%s2 + $0xa8] sm:$0xff]
  %v174 = vld [vmem:[%s2 + $0xb0] sm:$0xff]
  %v175 = vld [vmem:[%s2 + $0xb8] sm:$0xff]
  %v176 = vld [vmem:[%s2 + $0xc0] sm:$0xff]
  %v177 = vld [vmem:[%s2 + $0xc8] sm:$0xff]
  %v178 = vld [vmem:[%s2 + $0xd0] sm:$0xff]
  %v179 = vld [vmem:[%s2 + $0xd8] sm:$0xff]
  %v180 = vld [vmem:[%s2 + $0xe0] sm:$0xff]
  %v181 = vld [vmem:[%s2 + $0xe8] sm:$0xff]
  %v182 = vld [vmem:[%s2 + $0xf0] sm:$0xff]
  %v183 = vld [vmem:[%s2 + $0xf8] sm:$0xff]
  %v184 = vld [vmem:[%s2 + $0x100] sm:$0xff]
  %v185 = vld [vmem:[%s2 + $0x108] sm:$0xff]
  %v186 = vld [vmem:[%s2 + $0x110] sm:$0xff]
  %v187 = vld [vmem:[%s2 + $0x118] sm:$0xff]
  %v188 = vld [vmem:[%s2 + $0x120] sm:$0xff]
  %v189 = vld [vmem:[%s2 + $0x128] sm:$0xff]
  %v190 = vld [vmem:[%s2 + $0x130] sm:$0xff]
  %v191 = vld [vmem:[%s2 + $0x138] sm:$0xff]
  %v192 = vld [vmem:[%s2 + $0x140] sm:$0xff]
  %v193 = vld [vmem:[%s2 + $0x148] sm:$0xff]
  %v194 = vld [vmem:[%s2 + $0x150] sm:$0xff]
  %v195 = vld [vmem:[%s2 + $0x158] sm:$0xff]
  %v196 = vld [vmem:[%s2 + $0x160] sm:$0xff]
  %v197 = vld [vmem:[%s2 + $0x168] sm:$0xff]
  %v198 = vld [vmem:[%s2 + $0x170] sm:$0xff]
  %v199 = vld [vmem:[%s2 + $0x178] sm:$0xff]
  %v200 = vld [vmem:[%s2 + $0x180] sm:$0xff]
  %v201 = vld [vmem:[%s2 + $0x188] sm:$0xff]
  %v202 = vld [vmem:[%s2 + $0x190] sm:$0xff]
  %v203 = vld [vmem:[%s2 + $0x198] sm:$0xff]
  %v204 = vld [vmem:[%s2 + $0x1a0] sm:$0xff]
  %v205 = vld [vmem:[%s2 + $0x1a8] sm:$0xff]
  %v206 = vld [vmem:[%s2 + $0x1b0] sm:$0xff]
  %v207 = vld [vmem:[%s2 + $0x1b8] sm:$0xff]
  %v208 = vld [vmem:[%s2 + $0x1c0] sm:$0xff]
  %v209 = vld [vmem:[%s2 + $0x1c8] sm:$0xff]
  %v210 = vld [vmem:[%s2 + $0x1d0] sm:$0xff]
  %v211 = vld [vmem:[%s2 + $0x1d8] sm:$0xff]
  %v212 = vld [vmem:[%s2 + $0x1e0] sm:$0xff]
  %v213 = vld [vmem:[%s2 + $0x1e8] sm:$0xff]
  %v214 = vld [vmem:[%s2 + $0x1f0] sm:$0xff]
  %v215 = vld [vmem:[%s2 + $0x1f8] sm:$0xff]
  %v216 = vld [vmem:[%s2 + $0x200] sm:$0xff]
  %v217 = vld [vmem:[%s2 + $0x208] sm:$0xff]
  %v218 = vld [vmem:[%s2 + $0x210] sm:$0xff]
  %v219 = vld [vmem:[%s2 + $0x218] sm:$0xff]
  %v220 = vld [vmem:[%s2 + $0x220] sm:$0xff]
  %v221 = vld [vmem:[%s2 + $0x228] sm:$0xff]
  %v222 = vld [vmem:[%s2 + $0x230] sm:$0xff]
  %v223 = vld [vmem:[%s2 + $0x238] sm:$0xff]
  %v224 = vld [vmem:[%s2 + $0x240] sm:$0xff]
  %v225 = vld [vmem:[%s2 + $0x248] sm:$0xff]
  %v226 = vld [vmem:[%s2 + $0x250] sm:$0xff]
  %v227 = vld [vmem:[%s2 + $0x258] sm:$0xff]
  %v228 = vld [vmem:[%s2 + $0x260] sm:$0xff]
  %v229 = vld [vmem:[%s2 + $0x268] sm:$0xff]
  %v230 = vld [vmem:[%s2 + $0x270] sm:$0xff]
  %v231 = vld [vmem:[%s2 + $0x278] sm:$0xff]
  %v232 = vld [vmem:[%s2 + $0x280] sm:$0xff]
  %v233 = vld [vmem:[%s2 + $0x288] sm:$0xff]
  %v234 = vld [vmem:[%s2 + $0x290] sm:$0xff]
  %v235 = vld [vmem:[%s2 + $0x298] sm:$0xff]
  %v236 = vld [vmem:[%s2 + $0x2a0] sm:$0xff]
  %v237 = vld [vmem:[%s2 + $0x2a8] sm:$0xff]
  %v238 = vld [vmem:[%s2 + $0x2b0] sm:$0xff]
  %v239 = vld [vmem:[%s2 + $0x2b8] sm:$0xff]
  %v240 = vld [vmem:[%s2 + $0x2c0] sm:$0xff]
  %v241 = vld [vmem:[%s2 + $0x2c8] sm:$0xff]
  %v242 = vld [vmem:[%s2 + $0x2d0] sm:$0xff]
  %v243 = vld [vmem:[%s2 + $0x2d8] sm:$0xff]
  %v244 = vld [vmem:[%s2 + $0x2e0] sm:$0xff]
  %v245 = vld [vmem:[%s2 + $0x2e8] sm:$0xff]
  %v246 = vld [vmem:[%s2 + $0x2f0] sm:$0xff]
  %v247 = vld [vmem:[%s2 + $0x2f8] sm:$0xff]
  %v248 = vld [vmem:[%s2 + $0x300] sm:$0xff]
  %v249 = vld [vmem:[%s2 + $0x308] sm:$0xff]
  %v250 = vld [vmem:[%s2 + $0x310] sm:$0xff]
  %v251 = vld [vmem:[%s2 + $0x318] sm:$0xff]
  %v252 = vld [vmem:[%s2 + $0x320] sm:$0xff]
  %v253 = vld [vmem:[%s2 + $0x328] sm:$0xff]
  %v254 = vld [vmem:[%s2 + $0x330] sm:$0xff]
  %v255 = vld [vmem:[%s2 + $0x338] sm:$0xff]
  %v256 = vld [vmem:[%s2 + $0x340] sm:$0xff]
  %v257 = vld [vmem:[%s2 + $0x348] sm:$0xff]
  %v258 = vld [vmem:[%s2 + $0x350] sm:$0xff]
  %v259 = vld [vmem:[%s2 + $0x358] sm:$0xff]
  %v260 = vld [vmem:[%s2 + $0x360] sm:$0xff]
  %v261 = vld [vmem:[%s2 + $0x368] sm:$0xff]
  %v262 = vld [vmem:[%s2 + $0x370] sm:$0xff]
  %v263 = vld [vmem:[%s2 + $0x378] sm:$0xff]
  %v264 = vld [vmem:[%s2 + $0x380] sm:$0xff]
  %v265 = vld [vmem:[%s2 + $0x388] sm:$0xff]
  %v266 = vld [vmem:[%s2 + $0x390] sm:$0xff]
  %v267 = vld [vmem:[%s2 + $0x398] sm:$0xff]
  %v268 = vld [vmem:[%s2 + $0x3a0] sm:$0xff]
  %v269 = vld [vmem:[%s2 + $0x3a8] sm:$0xff]
  %v270 = vld [vmem:[%s2 + $0x3b0] sm:$0xff]
  %v271 = vld [vmem:[%s2 + $0x3b8] sm:$0xff]
  %v272 = vld [vmem:[%s2 + $0x3c0] sm:$0xff]
  %v273 = vld [vmem:[%s2 + $0x3c8] sm:$0xff]
  %v274 = vld [vmem:[%s2 + $0x3d0] sm:$0xff]
  %v275 = vld [vmem:[%s2 + $0x3d8] sm:$0xff]
  %v276 = vld [vmem:[%s2 + $0x3e0] sm:$0xff]
  %v277 = vld [vmem:[%s2 + $0x3e8] sm:$0xff]
  %v278 = vld [vmem:[%s2 + $0x3f0] sm:$0xff]
  %v279 = vld [vmem:[%s2 + $0x3f8] sm:$0xff]
  %v280 = vld [vmem:[%s2 + $0x400] sm:$0xff]
  %v281 = vld [vmem:[%s2 + $0x408] sm:$0xff]
  %v282 = vld [vmem:[%s2 + $0x410] sm:$0xff]
  %v283 = vld [vmem:[%s2 + $0x418] sm:$0xff]
  %vm284 = vcmask 359424
  %v286 = vsel %vm284, %v14, 0
  %v289 = vsel %vm284, %v15, 0
  %v292 = vsel %vm284, %v16, 0
  %v295 = vsel %vm284, %v17, 0
  %v298 = vsel %vm284, %v18, 0
  %v301 = vsel %vm284, %v19, 0
  %v304 = vsel %vm284, %v20, 0
  %v307 = vsel %vm284, %v21, 0
  %v310 = vsel %vm284, %v22, 0
  %v313 = vsel %vm284, %v23, 0
  %v316 = vsel %vm284, %v24, 0
  %v319 = vsel %vm284, %v25, 0
  %v322 = vsel %vm284, %v26, 0
  %v325 = vsel %vm284, %v27, 0
  %v328 = vsel %vm284, %v28, 0
  %v331 = vsel %vm284, %v29, 0
  %v334 = vsel %vm284, %v30, 0
  %v337 = vsel %vm284, %v31, 0
  %v340 = vsel %vm284, %v32, 0
  %v343 = vsel %vm284, %v33, 0
  %v346 = vsel %vm284, %v34, 0
  %v349 = vsel %vm284, %v35, 0
  %v352 = vsel %vm284, %v36, 0
  %v355 = vsel %vm284, %v37, 0
  %v358 = vsel %vm284, %v38, 0
  %v361 = vsel %vm284, %v39, 0
  %v364 = vsel %vm284, %v40, 0
  %v367 = vsel %vm284, %v41, 0
  %v370 = vsel %vm284, %v42, 0
  %v373 = vsel %vm284, %v43, 0
  %v376 = vsel %vm284, %v44, 0
  %v379 = vsel %vm284, %v45, 0
  %v382 = vsel %vm284, %v46, 0
  %v385 = vsel %vm284, %v47, 0
  %v388 = vsel %vm284, %v48, 0
  %v391 = vsel %vm284, %v49, 0
  %v394 = vsel %vm284, %v50, 0
  %v397 = vsel %vm284, %v51, 0
  %v400 = vsel %vm284, %v52, 0
  %v403 = vsel %vm284, %v53, 0
  %v406 = vsel %vm284, %v54, 0
  %v409 = vsel %vm284, %v55, 0
  %v412 = vsel %vm284, %v56, 0
  %v415 = vsel %vm284, %v57, 0
  %v418 = vsel %vm284, %v58, 0
  %v421 = vsel %vm284, %v59, 0
  %v424 = vsel %vm284, %v60, 0
  %v427 = vsel %vm284, %v61, 0
  %v430 = vsel %vm284, %v62, 0
  %v433 = vsel %vm284, %v63, 0
  %v436 = vsel %vm284, %v64, 0
  %v439 = vsel %vm284, %v65, 0
  %v442 = vsel %vm284, %v66, 0
  %v445 = vsel %vm284, %v67, 0
  %v448 = vsel %vm284, %v68, 0
  %v451 = vsel %vm284, %v69, 0
  %v454 = vsel %vm284, %v70, 0
  %v457 = vsel %vm284, %v71, 0
  %v460 = vsel %vm284, %v72, 0
  %v463 = vsel %vm284, %v73, 0
  %v466 = vsel %vm284, %v74, 0
  %v469 = vsel %vm284, %v75, 0
  %v472 = vsel %vm284, %v76, 0
  %v475 = vsel %vm284, %v77, 0
  %v478 = vsel %vm284, %v78, 0
  %v481 = vsel %vm284, %v79, 0
  %v484 = vsel %vm284, %v80, 0
  %v487 = vsel %vm284, %v81, 0
  %v490 = vsel %vm284, %v82, 0
  %v493 = vsel %vm284, %v83, 0
  %v496 = vsel %vm284, %v84, 0
  %v499 = vsel %vm284, %v85, 0
  %v502 = vsel %vm284, %v86, 0
  %v505 = vsel %vm284, %v87, 0
  %v508 = vsel %vm284, %v88, 0
  %v511 = vsel %vm284, %v89, 0
  %v514 = vsel %vm284, %v90, 0
  %v517 = vsel %vm284, %v91, 0
  %v520 = vsel %vm284, %v92, 0
  %v523 = vsel %vm284, %v93, 0
  %v526 = vsel %vm284, %v94, 0
  %v529 = vsel %vm284, %v95, 0
  %v532 = vsel %vm284, %v96, 0
  %v535 = vsel %vm284, %v97, 0
  %v538 = vsel %vm284, %v98, 0
  %v541 = vsel %vm284, %v99, 0
  %v544 = vsel %vm284, %v100, 0
  %v547 = vsel %vm284, %v101, 0
  %v550 = vsel %vm284, %v102, 0
  %v553 = vsel %vm284, %v103, 0
  %v556 = vsel %vm284, %v104, 0
  %v559 = vsel %vm284, %v105, 0
  %v562 = vsel %vm284, %v106, 0
  %v565 = vsel %vm284, %v107, 0
  %v568 = vsel %vm284, %v108, 0
  %v571 = vsel %vm284, %v109, 0
  %v574 = vsel %vm284, %v110, 0
  %v577 = vsel %vm284, %v111, 0
  %v580 = vsel %vm284, %v112, 0
  %v583 = vsel %vm284, %v113, 0
  %v586 = vsel %vm284, %v114, 0
  %v589 = vsel %vm284, %v115, 0
  %v592 = vsel %vm284, %v116, 0
  %v595 = vsel %vm284, %v117, 0
  %v598 = vsel %vm284, %v118, 0
  %v601 = vsel %vm284, %v119, 0
  %v604 = vsel %vm284, %v120, 0
  %v607 = vsel %vm284, %v121, 0
  %v610 = vsel %vm284, %v122, 0
  %v613 = vsel %vm284, %v123, 0
  %v616 = vsel %vm284, %v124, 0
  %v619 = vsel %vm284, %v125, 0
  %v622 = vsel %vm284, %v126, 0
  %v625 = vsel %vm284, %v127, 0
  %v628 = vsel %vm284, %v128, 0
  %v631 = vsel %vm284, %v129, 0
  %v634 = vsel %vm284, %v130, 0
  %v637 = vsel %vm284, %v131, 0
  %v640 = vsel %vm284, %v132, 0
  %v643 = vsel %vm284, %v133, 0
  %v646 = vsel %vm284, %v134, 0
  %v649 = vsel %vm284, %v135, 0
  %v652 = vsel %vm284, %v136, 0
  %v655 = vsel %vm284, %v137, 0
  %v658 = vsel %vm284, %v138, 0
  %v661 = vsel %vm284, %v139, 0
  %v664 = vsel %vm284, %v140, 0
  %v667 = vsel %vm284, %v141, 0
  %v670 = vsel %vm284, %v142, 0
  %v673 = vsel %vm284, %v143, 0
  %v676 = vsel %vm284, %v144, 0
  %v679 = vsel %vm284, %v145, 0
  %vm681 = vcmask 1043456
  %v683 = vsel %vm681, %v151, 0
  %685 = vmatpush.msra.mxu0 0.0
  %686 = vmatpush.msra.mxu0 0.0
  %687 = vmatpush.msra.mxu0 0.0
  %688 = vmatpush.msra.mxu0 0.0
  %689 = vmatpush.msra.mxu0 0.0
  %690 = vmatpush.msra.mxu0 0.0
  %691 = vmatpush.msra.mxu0 0.0
  %692 = vmatpush.msra.mxu0 0.0
  %693 = vmatpush.msra.mxu0 0.0
  %694 = vmatpush.msra.mxu0 0.0
  %695 = vmatpush.msra.mxu0 %v683
  %696 = vmatpush.msra.mxu0 %v150
  %697 = vmatpush.msra.mxu0 %v149
  %698 = vmatpush.msra.mxu0 %v148
  %699 = vmatpush.msra.mxu0 %v147
  %700 = vmatpush.msra.mxu0 %v146
  %701 = vmatmul.f32.gmra.mxu0 %v286
  %v702 = vpop.f32.mrf.mxu0
  %v703 = vadd.f32 %v152, %v702
  %704 = vmatmul.f32.gmra.mxu0 %v289
  %v705 = vpop.f32.mrf.mxu0
  %v706 = vadd.f32 %v153, %v705
  %707 = vmatmul.f32.gmra.mxu0 %v292
  %v708 = vpop.f32.mrf.mxu0
  %v709 = vadd.f32 %v154, %v708
  %710 = vmatmul.f32.gmra.mxu0 %v295
  %v711 = vpop.f32.mrf.mxu0
  %v712 = vadd.f32 %v155, %v711
  %713 = vmatmul.f32.gmra.mxu0 %v298
  %v714 = vpop.f32.mrf.mxu0
  %v715 = vadd.f32 %v156, %v714
  %716 = vmatmul.f32.gmra.mxu0 %v301
  %v717 = vpop.f32.mrf.mxu0
  %v718 = vadd.f32 %v157, %v717
  %719 = vmatmul.f32.gmra.mxu0 %v304
  %v720 = vpop.f32.mrf.mxu0
  %v721 = vadd.f32 %v158, %v720
  %722 = vmatmul.f32.gmra.mxu0 %v307
  %v723 = vpop.f32.mrf.mxu0
  %v724 = vadd.f32 %v159, %v723
  %725 = vmatmul.f32.gmra.mxu0 %v310
  %v726 = vpop.f32.mrf.mxu0
  %v727 = vadd.f32 %v160, %v726
  %728 = vmatmul.f32.gmra.mxu0 %v313
  %v729 = vpop.f32.mrf.mxu0
  %v730 = vadd.f32 %v161, %v729
  %731 = vmatmul.f32.gmra.mxu0 %v316
  %v732 = vpop.f32.mrf.mxu0
  %v733 = vadd.f32 %v162, %v732
  %734 = vmatmul.f32.gmra.mxu0 %v319
  %v735 = vpop.f32.mrf.mxu0
  %v736 = vadd.f32 %v163, %v735
  %737 = vmatmul.f32.gmra.mxu0 %v322
  %v738 = vpop.f32.mrf.mxu0
  %v739 = vadd.f32 %v164, %v738
  %740 = vmatmul.f32.gmra.mxu0 %v325
  %v741 = vpop.f32.mrf.mxu0
  %v742 = vadd.f32 %v165, %v741
  %743 = vmatmul.f32.gmra.mxu0 %v328
  %v744 = vpop.f32.mrf.mxu0
  %v745 = vadd.f32 %v166, %v744
  %746 = vmatmul.f32.gmra.mxu0 %v331
  %v747 = vpop.f32.mrf.mxu0
  %v748 = vadd.f32 %v167, %v747
  %749 = vmatmul.f32.gmra.mxu0 %v334
  %v750 = vpop.f32.mrf.mxu0
  %v751 = vadd.f32 %v168, %v750
  %752 = vmatmul.f32.gmra.mxu0 %v337
  %v753 = vpop.f32.mrf.mxu0
  %v754 = vadd.f32 %v169, %v753
  %755 = vmatmul.f32.gmra.mxu0 %v340
  %v756 = vpop.f32.mrf.mxu0
  %v757 = vadd.f32 %v170, %v756
  %758 = vmatmul.f32.gmra.mxu0 %v343
  %v759 = vpop.f32.mrf.mxu0
  %v760 = vadd.f32 %v171, %v759
  %761 = vmatmul.f32.gmra.mxu0 %v346
  %v762 = vpop.f32.mrf.mxu0
  %v763 = vadd.f32 %v172, %v762
  %764 = vmatmul.f32.gmra.mxu0 %v349
  %v765 = vpop.f32.mrf.mxu0
  %v766 = vadd.f32 %v173, %v765
  %767 = vmatmul.f32.gmra.mxu0 %v352
  %v768 = vpop.f32.mrf.mxu0
  %v769 = vadd.f32 %v174, %v768
  %770 = vmatmul.f32.gmra.mxu0 %v355
  %v771 = vpop.f32.mrf.mxu0
  %v772 = vadd.f32 %v175, %v771
  %773 = vmatmul.f32.gmra.mxu0 %v358
  %v774 = vpop.f32.mrf.mxu0
  %v775 = vadd.f32 %v176, %v774
  %776 = vmatmul.f32.gmra.mxu0 %v361
  %v777 = vpop.f32.mrf.mxu0
  %v778 = vadd.f32 %v177, %v777
  %779 = vmatmul.f32.gmra.mxu0 %v364
  %v780 = vpop.f32.mrf.mxu0
  %v781 = vadd.f32 %v178, %v780
  %782 = vmatmul.f32.gmra.mxu0 %v367
  %v783 = vpop.f32.mrf.mxu0
  %v784 = vadd.f32 %v179, %v783
  %785 = vmatmul.f32.gmra.mxu0 %v370
  %v786 = vpop.f32.mrf.mxu0
  %v787 = vadd.f32 %v180, %v786
  %788 = vmatmul.f32.gmra.mxu0 %v373
  %v789 = vpop.f32.mrf.mxu0
  %v790 = vadd.f32 %v181, %v789
  %791 = vmatmul.f32.gmra.mxu0 %v376
  %v792 = vpop.f32.mrf.mxu0
  %v793 = vadd.f32 %v182, %v792
  %794 = vmatmul.f32.gmra.mxu0 %v379
  %v795 = vpop.f32.mrf.mxu0
  %v796 = vadd.f32 %v183, %v795
  %797 = vmatmul.f32.gmra.mxu0 %v382
  %v798 = vpop.f32.mrf.mxu0
  %v799 = vadd.f32 %v184, %v798
  %800 = vmatmul.f32.gmra.mxu0 %v385
  %v801 = vpop.f32.mrf.mxu0
  %v802 = vadd.f32 %v185, %v801
  %803 = vmatmul.f32.gmra.mxu0 %v388
  %v804 = vpop.f32.mrf.mxu0
  %v805 = vadd.f32 %v186, %v804
  %806 = vmatmul.f32.gmra.mxu0 %v391
  %v807 = vpop.f32.mrf.mxu0
  %v808 = vadd.f32 %v187, %v807
  %809 = vmatmul.f32.gmra.mxu0 %v394
  %v810 = vpop.f32.mrf.mxu0
  %v811 = vadd.f32 %v188, %v810
  %812 = vmatmul.f32.gmra.mxu0 %v397
  %v813 = vpop.f32.mrf.mxu0
  %v814 = vadd.f32 %v189, %v813
  %815 = vmatmul.f32.gmra.mxu0 %v400
  %v816 = vpop.f32.mrf.mxu0
  %v817 = vadd.f32 %v190, %v816
  %818 = vmatmul.f32.gmra.mxu0 %v403
  %v819 = vpop.f32.mrf.mxu0
  %v820 = vadd.f32 %v191, %v819
  %821 = vmatmul.f32.gmra.mxu0 %v406
  %v822 = vpop.f32.mrf.mxu0
  %v823 = vadd.f32 %v192, %v822
  %824 = vmatmul.f32.gmra.mxu0 %v409
  %v825 = vpop.f32.mrf.mxu0
  %v826 = vadd.f32 %v193, %v825
  %827 = vmatmul.f32.gmra.mxu0 %v412
  %v828 = vpop.f32.mrf.mxu0
  %v829 = vadd.f32 %v194, %v828
  %830 = vmatmul.f32.gmra.mxu0 %v415
  %v831 = vpop.f32.mrf.mxu0
  %v832 = vadd.f32 %v195, %v831
  %833 = vmatmul.f32.gmra.mxu0 %v418
  %v834 = vpop.f32.mrf.mxu0
  %v835 = vadd.f32 %v196, %v834
  %836 = vmatmul.f32.gmra.mxu0 %v421
  %v837 = vpop.f32.mrf.mxu0
  %v838 = vadd.f32 %v197, %v837
  %839 = vmatmul.f32.gmra.mxu0 %v424
  %v840 = vpop.f32.mrf.mxu0
  %v841 = vadd.f32 %v198, %v840
  %842 = vmatmul.f32.gmra.mxu0 %v427
  %v843 = vpop.f32.mrf.mxu0
  %v844 = vadd.f32 %v199, %v843
  %845 = vmatmul.f32.gmra.mxu0 %v430
  %v846 = vpop.f32.mrf.mxu0
  %v847 = vadd.f32 %v200, %v846
  %848 = vmatmul.f32.gmra.mxu0 %v433
  %v849 = vpop.f32.mrf.mxu0
  %v850 = vadd.f32 %v201, %v849
  %851 = vmatmul.f32.gmra.mxu0 %v436
  %v852 = vpop.f32.mrf.mxu0
  %v853 = vadd.f32 %v202, %v852
  %854 = vmatmul.f32.gmra.mxu0 %v439
  %v855 = vpop.f32.mrf.mxu0
  %v856 = vadd.f32 %v203, %v855
  %857 = vmatmul.f32.gmra.mxu0 %v442
  %v858 = vpop.f32.mrf.mxu0
  %v859 = vadd.f32 %v204, %v858
  %860 = vmatmul.f32.gmra.mxu0 %v445
  %v861 = vpop.f32.mrf.mxu0
  %v862 = vadd.f32 %v205, %v861
  %863 = vmatmul.f32.gmra.mxu0 %v448
  %v864 = vpop.f32.mrf.mxu0
  %v865 = vadd.f32 %v206, %v864
  %866 = vmatmul.f32.gmra.mxu0 %v451
  %v867 = vpop.f32.mrf.mxu0
  %v868 = vadd.f32 %v207, %v867
  %869 = vmatmul.f32.gmra.mxu0 %v454
  %v870 = vpop.f32.mrf.mxu0
  %v871 = vadd.f32 %v208, %v870
  %872 = vmatmul.f32.gmra.mxu0 %v457
  %v873 = vpop.f32.mrf.mxu0
  %v874 = vadd.f32 %v209, %v873
  %875 = vmatmul.f32.gmra.mxu0 %v460
  %v876 = vpop.f32.mrf.mxu0
  %v877 = vadd.f32 %v210, %v876
  %878 = vmatmul.f32.gmra.mxu0 %v463
  %v879 = vpop.f32.mrf.mxu0
  %v880 = vadd.f32 %v211, %v879
  %881 = vmatmul.f32.gmra.mxu0 %v466
  %v882 = vpop.f32.mrf.mxu0
  %v883 = vadd.f32 %v212, %v882
  %884 = vmatmul.f32.gmra.mxu0 %v469
  %v885 = vpop.f32.mrf.mxu0
  %v886 = vadd.f32 %v213, %v885
  %887 = vmatmul.f32.gmra.mxu0 %v472
  %v888 = vpop.f32.mrf.mxu0
  %v889 = vadd.f32 %v214, %v888
  %890 = vmatmul.f32.gmra.mxu0 %v475
  %v891 = vpop.f32.mrf.mxu0
  %v892 = vadd.f32 %v215, %v891
  %893 = vmatmul.f32.gmra.mxu0 %v478
  %v894 = vpop.f32.mrf.mxu0
  %v895 = vadd.f32 %v216, %v894
  %896 = vmatmul.f32.gmra.mxu0 %v481
  %v897 = vpop.f32.mrf.mxu0
  %v898 = vadd.f32 %v217, %v897
  %899 = vmatmul.f32.gmra.mxu0 %v484
  %v900 = vpop.f32.mrf.mxu0
  %v901 = vadd.f32 %v218, %v900
  %902 = vmatmul.f32.gmra.mxu0 %v487
  %v903 = vpop.f32.mrf.mxu0
  %v904 = vadd.f32 %v219, %v903
  %905 = vmatmul.f32.gmra.mxu0 %v490
  %v906 = vpop.f32.mrf.mxu0
  %v907 = vadd.f32 %v220, %v906
  %908 = vmatmul.f32.gmra.mxu0 %v493
  %v909 = vpop.f32.mrf.mxu0
  %v910 = vadd.f32 %v221, %v909
  %911 = vmatmul.f32.gmra.mxu0 %v496
  %v912 = vpop.f32.mrf.mxu0
  %v913 = vadd.f32 %v222, %v912
  %914 = vmatmul.f32.gmra.mxu0 %v499
  %v915 = vpop.f32.mrf.mxu0
  %v916 = vadd.f32 %v223, %v915
  %917 = vmatmul.f32.gmra.mxu0 %v502
  %v918 = vpop.f32.mrf.mxu0
  %v919 = vadd.f32 %v224, %v918
  %920 = vmatmul.f32.gmra.mxu0 %v505
  %v921 = vpop.f32.mrf.mxu0
  %v922 = vadd.f32 %v225, %v921
  %923 = vmatmul.f32.gmra.mxu0 %v508
  %v924 = vpop.f32.mrf.mxu0
  %v925 = vadd.f32 %v226, %v924
  %926 = vmatmul.f32.gmra.mxu0 %v511
  %v927 = vpop.f32.mrf.mxu0
  %v928 = vadd.f32 %v227, %v927
  %929 = vmatmul.f32.gmra.mxu0 %v514
  %v930 = vpop.f32.mrf.mxu0
  %v931 = vadd.f32 %v228, %v930
  %932 = vmatmul.f32.gmra.mxu0 %v517
  %v933 = vpop.f32.mrf.mxu0
  %v934 = vadd.f32 %v229, %v933
  %935 = vmatmul.f32.gmra.mxu0 %v520
  %v936 = vpop.f32.mrf.mxu0
  %v937 = vadd.f32 %v230, %v936
  %938 = vmatmul.f32.gmra.mxu0 %v523
  %v939 = vpop.f32.mrf.mxu0
  %v940 = vadd.f32 %v231, %v939
  %941 = vmatmul.f32.gmra.mxu0 %v526
  %v942 = vpop.f32.mrf.mxu0
  %v943 = vadd.f32 %v232, %v942
  %944 = vmatmul.f32.gmra.mxu0 %v529
  %v945 = vpop.f32.mrf.mxu0
  %v946 = vadd.f32 %v233, %v945
  %947 = vmatmul.f32.gmra.mxu0 %v532
  %v948 = vpop.f32.mrf.mxu0
  %v949 = vadd.f32 %v234, %v948
  %950 = vmatmul.f32.gmra.mxu0 %v535
  %v951 = vpop.f32.mrf.mxu0
  %v952 = vadd.f32 %v235, %v951
  %953 = vmatmul.f32.gmra.mxu0 %v538
  %v954 = vpop.f32.mrf.mxu0
  %v955 = vadd.f32 %v236, %v954
  %956 = vmatmul.f32.gmra.mxu0 %v541
  %v957 = vpop.f32.mrf.mxu0
  %v958 = vadd.f32 %v237, %v957
  %959 = vmatmul.f32.gmra.mxu0 %v544
  %v960 = vpop.f32.mrf.mxu0
  %v961 = vadd.f32 %v238, %v960
  %962 = vmatmul.f32.gmra.mxu0 %v547
  %v963 = vpop.f32.mrf.mxu0
  %v964 = vadd.f32 %v239, %v963
  %965 = vmatmul.f32.gmra.mxu0 %v550
  %v966 = vpop.f32.mrf.mxu0
  %v967 = vadd.f32 %v240, %v966
  %968 = vmatmul.f32.gmra.mxu0 %v553
  %v969 = vpop.f32.mrf.mxu0
  %v970 = vadd.f32 %v241, %v969
  %971 = vmatmul.f32.gmra.mxu0 %v556
  %v972 = vpop.f32.mrf.mxu0
  %v973 = vadd.f32 %v242, %v972
  %974 = vmatmul.f32.gmra.mxu0 %v559
  %v975 = vpop.f32.mrf.mxu0
  %v976 = vadd.f32 %v243, %v975
  %977 = vmatmul.f32.gmra.mxu0 %v562
  %v978 = vpop.f32.mrf.mxu0
  %v979 = vadd.f32 %v244, %v978
  %980 = vmatmul.f32.gmra.mxu0 %v565
  %v981 = vpop.f32.mrf.mxu0
  %v982 = vadd.f32 %v245, %v981
  %983 = vmatmul.f32.gmra.mxu0 %v568
  %v984 = vpop.f32.mrf.mxu0
  %v985 = vadd.f32 %v246, %v984
  %986 = vmatmul.f32.gmra.mxu0 %v571
  %v987 = vpop.f32.mrf.mxu0
  %v988 = vadd.f32 %v247, %v987
  %989 = vmatmul.f32.gmra.mxu0 %v574
  %v990 = vpop.f32.mrf.mxu0
  %v991 = vadd.f32 %v248, %v990
  %992 = vmatmul.f32.gmra.mxu0 %v577
  %v993 = vpop.f32.mrf.mxu0
  %v994 = vadd.f32 %v249, %v993
  %995 = vmatmul.f32.gmra.mxu0 %v580
  %v996 = vpop.f32.mrf.mxu0
  %v997 = vadd.f32 %v250, %v996
  %998 = vmatmul.f32.gmra.mxu0 %v583
  %v999 = vpop.f32.mrf.mxu0
  %v1000 = vadd.f32 %v251, %v999
  %1001 = vmatmul.f32.gmra.mxu0 %v586
  %v1002 = vpop.f32.mrf.mxu0
  %v1003 = vadd.f32 %v252, %v1002
  %1004 = vmatmul.f32.gmra.mxu0 %v589
  %v1005 = vpop.f32.mrf.mxu0
  %v1006 = vadd.f32 %v253, %v1005
  %1007 = vmatmul.f32.gmra.mxu0 %v592
  %v1008 = vpop.f32.mrf.mxu0
  %v1009 = vadd.f32 %v254, %v1008
  %1010 = vmatmul.f32.gmra.mxu0 %v595
  %v1011 = vpop.f32.mrf.mxu0
  %v1012 = vadd.f32 %v255, %v1011
  %1013 = vmatmul.f32.gmra.mxu0 %v598
  %v1014 = vpop.f32.mrf.mxu0
  %v1015 = vadd.f32 %v256, %v1014
  %1016 = vmatmul.f32.gmra.mxu0 %v601
  %v1017 = vpop.f32.mrf.mxu0
  %v1018 = vadd.f32 %v257, %v1017
  %1019 = vmatmul.f32.gmra.mxu0 %v604
  %v1020 = vpop.f32.mrf.mxu0
  %v1021 = vadd.f32 %v258, %v1020
  %1022 = vmatmul.f32.gmra.mxu0 %v607
  %v1023 = vpop.f32.mrf.mxu0
  %v1024 = vadd.f32 %v259, %v1023
  %1025 = vmatmul.f32.gmra.mxu0 %v610
  %v1026 = vpop.f32.mrf.mxu0
  %v1027 = vadd.f32 %v260, %v1026
  %1028 = vmatmul.f32.gmra.mxu0 %v613
  %v1029 = vpop.f32.mrf.mxu0
  %v1030 = vadd.f32 %v261, %v1029
  %1031 = vmatmul.f32.gmra.mxu0 %v616
  %v1032 = vpop.f32.mrf.mxu0
  %v1033 = vadd.f32 %v262, %v1032
  %1034 = vmatmul.f32.gmra.mxu0 %v619
  %v1035 = vpop.f32.mrf.mxu0
  %v1036 = vadd.f32 %v263, %v1035
  %1037 = vmatmul.f32.gmra.mxu0 %v622
  %v1038 = vpop.f32.mrf.mxu0
  %v1039 = vadd.f32 %v264, %v1038
  %1040 = vmatmul.f32.gmra.mxu0 %v625
  %v1041 = vpop.f32.mrf.mxu0
  %v1042 = vadd.f32 %v265, %v1041
  %1043 = vmatmul.f32.gmra.mxu0 %v628
  %v1044 = vpop.f32.mrf.mxu0
  %v1045 = vadd.f32 %v266, %v1044
  %1046 = vmatmul.f32.gmra.mxu0 %v631
  %v1047 = vpop.f32.mrf.mxu0
  %v1048 = vadd.f32 %v267, %v1047
  %1049 = vmatmul.f32.gmra.mxu0 %v634
  %v1050 = vpop.f32.mrf.mxu0
  %v1051 = vadd.f32 %v268, %v1050
  %1052 = vmatmul.f32.gmra.mxu0 %v637
  %v1053 = vpop.f32.mrf.mxu0
  %v1054 = vadd.f32 %v269, %v1053
  %1055 = vmatmul.f32.gmra.mxu0 %v640
  %v1056 = vpop.f32.mrf.mxu0
  %v1057 = vadd.f32 %v270, %v1056
  %1058 = vmatmul.f32.gmra.mxu0 %v643
  %v1059 = vpop.f32.mrf.mxu0
  %v1060 = vadd.f32 %v271, %v1059
  %1061 = vmatmul.f32.gmra.mxu0 %v646
  %v1062 = vpop.f32.mrf.mxu0
  %v1063 = vadd.f32 %v272, %v1062
  %1064 = vmatmul.f32.gmra.mxu0 %v649
  %v1065 = vpop.f32.mrf.mxu0
  %v1066 = vadd.f32 %v273, %v1065
  %1067 = vmatmul.f32.gmra.mxu0 %v652
  %v1068 = vpop.f32.mrf.mxu0
  %v1069 = vadd.f32 %v274, %v1068
  %1070 = vmatmul.f32.gmra.mxu0 %v655
  %v1071 = vpop.f32.mrf.mxu0
  %v1072 = vadd.f32 %v275, %v1071
  %1073 = vmatmul.f32.gmra.mxu0 %v658
  %v1074 = vpop.f32.mrf.mxu0
  %v1075 = vadd.f32 %v276, %v1074
  %1076 = vmatmul.f32.gmra.mxu0 %v661
  %v1077 = vpop.f32.mrf.mxu0
  %v1078 = vadd.f32 %v277, %v1077
  %1079 = vmatmul.f32.gmra.mxu0 %v664
  %v1080 = vpop.f32.mrf.mxu0
  %v1081 = vadd.f32 %v278, %v1080
  %1082 = vmatmul.f32.gmra.mxu0 %v667
  %v1083 = vpop.f32.mrf.mxu0
  %v1084 = vadd.f32 %v279, %v1083
  %1085 = vmatmul.f32.gmra.mxu0 %v670
  %v1086 = vpop.f32.mrf.mxu0
  %v1087 = vadd.f32 %v280, %v1086
  %1088 = vmatmul.f32.gmra.mxu0 %v673
  %v1089 = vpop.f32.mrf.mxu0
  %v1090 = vadd.f32 %v281, %v1089
  %1091 = vmatmul.f32.gmra.mxu0 %v676
  %v1092 = vpop.f32.mrf.mxu0
  %v1093 = vadd.f32 %v282, %v1092
  %1094 = vmatmul.f32.gmra.mxu0 %v679
  %v1095 = vpop.f32.mrf.mxu0
  %v1096 = vadd.f32 %v283, %v1095
  %1097 = vdwg.mxu0
  %vm1098 = vcmask 7168
  %1099 = vst.msk [vmem:[%s3] sm:$0xff] %vm1098, %v703
  %1100 = vst.msk [vmem:[%s3 + $0x8] sm:$0xff] %vm1098, %v706
  %1101 = vst.msk [vmem:[%s3 + $0x10] sm:$0xff] %vm1098, %v709
  %1102 = vst.msk [vmem:[%s3 + $0x18] sm:$0xff] %vm1098, %v712
  %1103 = vst.msk [vmem:[%s3 + $0x20] sm:$0xff] %vm1098, %v715
  %1104 = vst.msk [vmem:[%s3 + $0x28] sm:$0xff] %vm1098, %v718
  %1105 = vst.msk [vmem:[%s3 + $0x30] sm:$0xff] %vm1098, %v721
  %1106 = vst.msk [vmem:[%s3 + $0x38] sm:$0xff] %vm1098, %v724
  %1107 = vst.msk [vmem:[%s3 + $0x40] sm:$0xff] %vm1098, %v727
  %1108 = vst.msk [vmem:[%s3 + $0x48] sm:$0xff] %vm1098, %v730
  %1109 = vst.msk [vmem:[%s3 + $0x50] sm:$0xff] %vm1098, %v733
  %1110 = vst.msk [vmem:[%s3 + $0x58] sm:$0xff] %vm1098, %v736
  %1111 = vst.msk [vmem:[%s3 + $0x60] sm:$0xff] %vm1098, %v739
  %1112 = vst.msk [vmem:[%s3 + $0x68] sm:$0xff] %vm1098, %v742
  %1113 = vst.msk [vmem:[%s3 + $0x70] sm:$0xff] %vm1098, %v745
  %1114 = vst.msk [vmem:[%s3 + $0x78] sm:$0xff] %vm1098, %v748
  %1115 = vst.msk [vmem:[%s3 + $0x80] sm:$0xff] %vm1098, %v751
  %1116 = vst.msk [vmem:[%s3 + $0x88] sm:$0xff] %vm1098, %v754
  %1117 = vst.msk [vmem:[%s3 + $0x90] sm:$0xff] %vm1098, %v757
  %1118 = vst.msk [vmem:[%s3 + $0x98] sm:$0xff] %vm1098, %v760
  %1119 = vst.msk [vmem:[%s3 + $0xa0] sm:$0xff] %vm1098, %v763
  %1120 = vst.msk [vmem:[%s3 + $0xa8] sm:$0xff] %vm1098, %v766
  %1121 = vst.msk [vmem:[%s3 + $0xb0] sm:$0xff] %vm1098, %v769
  %1122 = vst.msk [vmem:[%s3 + $0xb8] sm:$0xff] %vm1098, %v772
  %1123 = vst.msk [vmem:[%s3 + $0xc0] sm:$0xff] %vm1098, %v775
  %1124 = vst.msk [vmem:[%s3 + $0xc8] sm:$0xff] %vm1098, %v778
  %1125 = vst.msk [vmem:[%s3 + $0xd0] sm:$0xff] %vm1098, %v781
  %1126 = vst.msk [vmem:[%s3 + $0xd8] sm:$0xff] %vm1098, %v784
  %1127 = vst.msk [vmem:[%s3 + $0xe0] sm:$0xff] %vm1098, %v787
  %1128 = vst.msk [vmem:[%s3 + $0xe8] sm:$0xff] %vm1098, %v790
  %1129 = vst.msk [vmem:[%s3 + $0xf0] sm:$0xff] %vm1098, %v793
  %1130 = vst.msk [vmem:[%s3 + $0xf8] sm:$0xff] %vm1098, %v796
  %1131 = vst.msk [vmem:[%s3 + $0x100] sm:$0xff] %vm1098, %v799
  %1132 = vst.msk [vmem:[%s3 + $0x108] sm:$0xff] %vm1098, %v802
  %1133 = vst.msk [vmem:[%s3 + $0x110] sm:$0xff] %vm1098, %v805
  %1134 = vst.msk [vmem:[%s3 + $0x118] sm:$0xff] %vm1098, %v808
  %1135 = vst.msk [vmem:[%s3 + $0x120] sm:$0xff] %vm1098, %v811
  %1136 = vst.msk [vmem:[%s3 + $0x128] sm:$0xff] %vm1098, %v814
  %1137 = vst.msk [vmem:[%s3 + $0x130] sm:$0xff] %vm1098, %v817
  %1138 = vst.msk [vmem:[%s3 + $0x138] sm:$0xff] %vm1098, %v820
  %1139 = vst.msk [vmem:[%s3 + $0x140] sm:$0xff] %vm1098, %v823
  %1140 = vst.msk [vmem:[%s3 + $0x148] sm:$0xff] %vm1098, %v826
  %1141 = vst.msk [vmem:[%s3 + $0x150] sm:$0xff] %vm1098, %v829
  %1142 = vst.msk [vmem:[%s3 + $0x158] sm:$0xff] %vm1098, %v832
  %1143 = vst.msk [vmem:[%s3 + $0x160] sm:$0xff] %vm1098, %v835
  %1144 = vst.msk [vmem:[%s3 + $0x168] sm:$0xff] %vm1098, %v838
  %1145 = vst.msk [vmem:[%s3 + $0x170] sm:$0xff] %vm1098, %v841
  %1146 = vst.msk [vmem:[%s3 + $0x178] sm:$0xff] %vm1098, %v844
  %1147 = vst.msk [vmem:[%s3 + $0x180] sm:$0xff] %vm1098, %v847
  %1148 = vst.msk [vmem:[%s3 + $0x188] sm:$0xff] %vm1098, %v850
  %1149 = vst.msk [vmem:[%s3 + $0x190] sm:$0xff] %vm1098, %v853
  %1150 = vst.msk [vmem:[%s3 + $0x198] sm:$0xff] %vm1098, %v856
  %1151 = vst.msk [vmem:[%s3 + $0x1a0] sm:$0xff] %vm1098, %v859
  %1152 = vst.msk [vmem:[%s3 + $0x1a8] sm:$0xff] %vm1098, %v862
  %1153 = vst.msk [vmem:[%s3 + $0x1b0] sm:$0xff] %vm1098, %v865
  %1154 = vst.msk [vmem:[%s3 + $0x1b8] sm:$0xff] %vm1098, %v868
  %1155 = vst.msk [vmem:[%s3 + $0x1c0] sm:$0xff] %vm1098, %v871
  %1156 = vst.msk [vmem:[%s3 + $0x1c8] sm:$0xff] %vm1098, %v874
  %1157 = vst.msk [vmem:[%s3 + $0x1d0] sm:$0xff] %vm1098, %v877
  %1158 = vst.msk [vmem:[%s3 + $0x1d8] sm:$0xff] %vm1098, %v880
  %1159 = vst.msk [vmem:[%s3 + $0x1e0] sm:$0xff] %vm1098, %v883
  %1160 = vst.msk [vmem:[%s3 + $0x1e8] sm:$0xff] %vm1098, %v886
  %1161 = vst.msk [vmem:[%s3 + $0x1f0] sm:$0xff] %vm1098, %v889
  %1162 = vst.msk [vmem:[%s3 + $0x1f8] sm:$0xff] %vm1098, %v892
  %1163 = vst.msk [vmem:[%s3 + $0x200] sm:$0xff] %vm1098, %v895
  %1164 = vst.msk [vmem:[%s3 + $0x208] sm:$0xff] %vm1098, %v898
  %1165 = vst.msk [vmem:[%s3 + $0x210] sm:$0xff] %vm1098, %v901
  %1166 = vst.msk [vmem:[%s3 + $0x218] sm:$0xff] %vm1098, %v904
  %1167 = vst.msk [vmem:[%s3 + $0x220] sm:$0xff] %vm1098, %v907
  %1168 = vst.msk [vmem:[%s3 + $0x228] sm:$0xff] %vm1098, %v910
  %1169 = vst.msk [vmem:[%s3 + $0x230] sm:$0xff] %vm1098, %v913
  %1170 = vst.msk [vmem:[%s3 + $0x238] sm:$0xff] %vm1098, %v916
  %1171 = vst.msk [vmem:[%s3 + $0x240] sm:$0xff] %vm1098, %v919
  %1172 = vst.msk [vmem:[%s3 + $0x248] sm:$0xff] %vm1098, %v922
  %1173 = vst.msk [vmem:[%s3 + $0x250] sm:$0xff] %vm1098, %v925
  %1174 = vst.msk [vmem:[%s3 + $0x258] sm:$0xff] %vm1098, %v928
  %1175 = vst.msk [vmem:[%s3 + $0x260] sm:$0xff] %vm1098, %v931
  %1176 = vst.msk [vmem:[%s3 + $0x268] sm:$0xff] %vm1098, %v934
  %1177 = vst.msk [vmem:[%s3 + $0x270] sm:$0xff] %vm1098, %v937
  %1178 = vst.msk [vmem:[%s3 + $0x278] sm:$0xff] %vm1098, %v940
  %1179 = vst.msk [vmem:[%s3 + $0x280] sm:$0xff] %vm1098, %v943
  %1180 = vst.msk [vmem:[%s3 + $0x288] sm:$0xff] %vm1098, %v946
  %1181 = vst.msk [vmem:[%s3 + $0x290] sm:$0xff] %vm1098, %v949
  %1182 = vst.msk [vmem:[%s3 + $0x298] sm:$0xff] %vm1098, %v952
  %1183 = vst.msk [vmem:[%s3 + $0x2a0] sm:$0xff] %vm1098, %v955
  %1184 = vst.msk [vmem:[%s3 + $0x2a8] sm:$0xff] %vm1098, %v958
  %1185 = vst.msk [vmem:[%s3 + $0x2b0] sm:$0xff] %vm1098, %v961
  %1186 = vst.msk [vmem:[%s3 + $0x2b8] sm:$0xff] %vm1098, %v964
  %1187 = vst.msk [vmem:[%s3 + $0x2c0] sm:$0xff] %vm1098, %v967
  %1188 = vst.msk [vmem:[%s3 + $0x2c8] sm:$0xff] %vm1098, %v970
  %1189 = vst.msk [vmem:[%s3 + $0x2d0] sm:$0xff] %vm1098, %v973
  %1190 = vst.msk [vmem:[%s3 + $0x2d8] sm:$0xff] %vm1098, %v976
  %1191 = vst.msk [vmem:[%s3 + $0x2e0] sm:$0xff] %vm1098, %v979
  %1192 = vst.msk [vmem:[%s3 + $0x2e8] sm:$0xff] %vm1098, %v982
  %1193 = vst.msk [vmem:[%s3 + $0x2f0] sm:$0xff] %vm1098, %v985
  %1194 = vst.msk [vmem:[%s3 + $0x2f8] sm:$0xff] %vm1098, %v988
  %1195 = vst.msk [vmem:[%s3 + $0x300] sm:$0xff] %vm1098, %v991
  %1196 = vst.msk [vmem:[%s3 + $0x308] sm:$0xff] %vm1098, %v994
  %1197 = vst.msk [vmem:[%s3 + $0x310] sm:$0xff] %vm1098, %v997
  %1198 = vst.msk [vmem:[%s3 + $0x318] sm:$0xff] %vm1098, %v1000
  %1199 = vst.msk [vmem:[%s3 + $0x320] sm:$0xff] %vm1098, %v1003
  %1200 = vst.msk [vmem:[%s3 + $0x328] sm:$0xff] %vm1098, %v1006
  %1201 = vst.msk [vmem:[%s3 + $0x330] sm:$0xff] %vm1098, %v1009
  %1202 = vst.msk [vmem:[%s3 + $0x338] sm:$0xff] %vm1098, %v1012
  %1203 = vst.msk [vmem:[%s3 + $0x340] sm:$0xff] %vm1098, %v1015
  %1204 = vst.msk [vmem:[%s3 + $0x348] sm:$0xff] %vm1098, %v1018
  %1205 = vst.msk [vmem:[%s3 + $0x350] sm:$0xff] %vm1098, %v1021
  %1206 = vst.msk [vmem:[%s3 + $0x358] sm:$0xff] %vm1098, %v1024
  %1207 = vst.msk [vmem:[%s3 + $0x360] sm:$0xff] %vm1098, %v1027
  %1208 = vst.msk [vmem:[%s3 + $0x368] sm:$0xff] %vm1098, %v1030
  %1209 = vst.msk [vmem:[%s3 + $0x370] sm:$0xff] %vm1098, %v1033
  %1210 = vst.msk [vmem:[%s3 + $0x378] sm:$0xff] %vm1098, %v1036
  %1211 = vst.msk [vmem:[%s3 + $0x380] sm:$0xff] %vm1098, %v1039
  %1212 = vst.msk [vmem:[%s3 + $0x388] sm:$0xff] %vm1098, %v1042
  %1213 = vst.msk [vmem:[%s3 + $0x390] sm:$0xff] %vm1098, %v1045
  %1214 = vst.msk [vmem:[%s3 + $0x398] sm:$0xff] %vm1098, %v1048
  %1215 = vst.msk [vmem:[%s3 + $0x3a0] sm:$0xff] %vm1098, %v1051
  %1216 = vst.msk [vmem:[%s3 + $0x3a8] sm:$0xff] %vm1098, %v1054
  %1217 = vst.msk [vmem:[%s3 + $0x3b0] sm:$0xff] %vm1098, %v1057
  %1218 = vst.msk [vmem:[%s3 + $0x3b8] sm:$0xff] %vm1098, %v1060
  %1219 = vst.msk [vmem:[%s3 + $0x3c0] sm:$0xff] %vm1098, %v1063
  %1220 = vst.msk [vmem:[%s3 + $0x3c8] sm:$0xff] %vm1098, %v1066
  %1221 = vst.msk [vmem:[%s3 + $0x3d0] sm:$0xff] %vm1098, %v1069
  %1222 = vst.msk [vmem:[%s3 + $0x3d8] sm:$0xff] %vm1098, %v1072
  %1223 = vst.msk [vmem:[%s3 + $0x3e0] sm:$0xff] %vm1098, %v1075
  %1224 = vst.msk [vmem:[%s3 + $0x3e8] sm:$0xff] %vm1098, %v1078
  %1225 = vst.msk [vmem:[%s3 + $0x3f0] sm:$0xff] %vm1098, %v1081
  %1226 = vst.msk [vmem:[%s3 + $0x3f8] sm:$0xff] %vm1098, %v1084
  %1227 = vst.msk [vmem:[%s3 + $0x400] sm:$0xff] %vm1098, %v1087
  %1228 = vst.msk [vmem:[%s3 + $0x408] sm:$0xff] %vm1098, %v1090
  %1229 = vst.msk [vmem:[%s3 + $0x410] sm:$0xff] %vm1098, %v1093
  %1230 = vst.msk [vmem:[%s3 + $0x418] sm:$0xff] %vm1098, %v1096
  // Predicated region
  $region14: #{tpu_custom_call.1} parent=0 // pred_check
    _
  $region15: #{tpu_custom_call.1} parent=0 // pred_check_branch
    %1232 = sbr.rel (0) target = $region17
  $region16: #{tpu_custom_call.1} parent=0 // pred_region
    _
  $region17: #{tpu_custom_call.1} parent=0 // pred_fallthru
    _
  // Predicated region
  $region18: #{tpu_custom_call.1} parent=0 // pred_check
    _
  $region19: #{tpu_custom_call.1} parent=0 // pred_check_branch
    %1234 = sbr.rel (0) target = $region21
  $region20: #{tpu_custom_call.1} parent=0 // pred_region
    _
  $region21: #{tpu_custom_call.1} parent=0 // pred_fallthru
    _

</llo_original>
